<compile_context>
chip_gen: v7x
topology: tpu7x:2x2x1
jax: 0.10.0
libtpu: 0.0.40
codegen_flags: <defaults>
</compile_context>

<pallas_src>
import math
from functools import partial

import jax
import jax.numpy as jnp
from jax.experimental import pallas as pl
from jax.experimental.pallas import tpu as pltpu

_GN_EPS = 1e-5                        # PyTorch GroupNorm default eps
_INV_SQRT2 = 1.0 / math.sqrt(2.0)
_COMPUTE_DTYPE = jnp.bfloat16         # MXU operand dtype (v5e/v6e/v7x are bf16-native)
_STORE_DTYPE = jnp.bfloat16           # HBM-stored intermediates (y1 / skip_t / y2)


# ------------------------------------------------------------------ generation-aware budgets

_BUDGET_CACHE = None


def _vmem_budgets():
    """(vmem_limit_bytes, per-step tile budget, fully-fused per-sample budget).

    Derived from the physical VMEM of the local generation: v5e/v6e = 128 MiB, v7x = 64 MiB.
    """
    global _BUDGET_CACHE
    if _BUDGET_CACHE is None:
        phys = 64 * 1024 * 1024                      # conservative default (v7x)
        try:
            info = pltpu.get_tpu_info()
            phys = int(getattr(info, "vmem_capacity_bytes", phys))
        except Exception:
            pass
        vmem_limit = min(phys * 3 // 4, 96 * 1024 * 1024)    # 96 MiB on v5e/v6e, 48 MiB on v7x
        tile_budget = min(phys // 5, 24 * 1024 * 1024)       # 24 MiB on v5e/v6e, ~13 MiB on v7x
        fused_budget = min(int(phys * 0.55), vmem_limit)     # ~70 MiB / ~35 MiB
        _BUDGET_CACHE = (vmem_limit, tile_budget, fused_budget)
    return _BUDGET_CACHE


def _pick_tile_len(L, per_col_bytes, fixed_bytes, budget):
    """Largest lane-aligned tile length dividing L that fits the per-step VMEM budget.

    per_col_bytes: double-buffered bytes per L-column for all L-tiled operands (in + out).
    fixed_bytes:   resident blocks (weights x2 buffers, bias/gamma/beta, stats accumulators).
    """
    avail = budget - fixed_bytes
    if L <= 128 or L * per_col_bytes <= avail:
        return L                                   # full-extent block (always legal)
    if L % 128 != 0:
        return L                                   # callers pad L>128 to a lane multiple
    t = max(128, (min(L, max(avail, 0) // per_col_bytes) // 128) * 128)
    while t > 128:
        if L % t == 0:
            return t
        t -= 128
    return 128


def _pad_lanes(x):
    """Pad the last axis up to a multiple of 128 (only when tiling could be required)."""
    L = x.shape[-1]
    if L <= 128 or L % 128 == 0:
        return x
    Lp = ((L + 127) // 128) * 128
    return jnp.pad(x, ((0, 0), (0, 0), (0, Lp - L)))


def _fits_fused(B, Cskip, Cdec, Cout, Lp, in_dtype, out_dtype, budget):
    """Does one sample's whole activation working set fit the fully-fused VMEM budget?"""
    del B
    ib = jnp.dtype(in_dtype).itemsize
    ob = jnp.dtype(out_dtype).itemsize
    wb = jnp.dtype(_COMPUTE_DTYPE).itemsize
    act_io = 2 * Lp * (Cskip * ib + Cdec * ib + Cout * ob)     # pipelined in/out tiles (x2 buffers)
    interm = 4 * Lp * (2 * Cdec + Cout)                        # y1, skip_t, y2 kept in f32 VMEM
    weights = 2 * wb * (Cdec * Cskip + 2 * Cout * Cdec)        # bf16 weights, double-buffered
    misc = 2 * 4 * (3 * Cdec + 3 * Cout)                       # bias / gamma / beta
    return act_io + interm + weights + misc <= budget


# ------------------------------------------------------------------ in-kernel helpers

def _gelu(y):
    # exact erf-GELU (matches nn.GELU() default)
    return 0.5 * y * (1.0 + jax.lax.erf(y * jnp.float32(_INV_SQRT2)))


def _masked_sum_sumsq(y, tile_cols, li, valid_len, full_len):
    """Per-tile sum / sum-of-squares; masks padded lane columns (static no-op when unpadded)."""
    if valid_len < full_len:
        col = jax.lax.broadcasted_iota(jnp.int32, y.shape, 1) + li * tile_cols
        y = jnp.where(col < valid_len, y, 0.0)
    s = jnp.sum(jnp.sum(y, axis=1, keepdims=True), axis=0, keepdims=True)
    ss = jnp.sum(jnp.sum(y * y, axis=1, keepdims=True), axis=0, keepdims=True)
    return s, ss


def _accumulate_stats(sum_ref, ssq_ref, s, ss, is_first):
    """Accumulate per-sample sum / sumsq into two resident (1,1,128) VMEM blocks (no concat)."""
    @pl.when(is_first)
    def _():
        sum_ref[...] = jnp.zeros_like(sum_ref)
        ssq_ref[...] = jnp.zeros_like(ssq_ref)
    sum_ref[0] += jnp.broadcast_to(s, (1, 128))
    ssq_ref[0] += jnp.broadcast_to(ss, (1, 128))


def _mu_rstd(sum_ref, ssq_ref, inv_n):
    """(1,1) mean and inv-std from the accumulated one-pass GN statistics."""
    s = sum_ref[0][0:1, 0:1]
    ss = ssq_ref[0][0:1, 0:1]
    mu = s * inv_n
    var = jnp.maximum(ss * inv_n - mu * mu, 0.0)
    return mu, jax.lax.rsqrt(var + _GN_EPS)


# ------------------------------------------------------------------ kernel bodies

def _conv_stats_kernel(x_ref, w_ref, b_ref, y_ref, sum_ref, ssq_ref, *, tl, valid_len, full_len):
    """y = W @ x + b for one (batch, L-tile); accumulate masked per-sample sum/sumsq."""
    li = pl.program_id(1)
    y = jnp.dot(w_ref[...], x_ref[0].astype(_COMPUTE_DTYPE), preferred_element_type=jnp.float32)
    y = y + b_ref[...]                                           # (Cout, TL) + (Cout, 1)
    y_ref[0] = y.astype(y_ref.dtype)
    s, ss = _masked_sum_sumsq(y, tl, li, valid_len, full_len)
    _accumulate_stats(sum_ref, ssq_ref, s, ss, li == 0)


def _dual_conv_stats_kernel(a_ref, c_ref, wa_ref, wc_ref, b_ref, y_ref, sum_ref, ssq_ref,
                            *, tl, valid_len, full_len):
    """Fusion conv without the channel concat: y = Wa @ a + Wc @ c + b; accumulate stats."""
    li = pl.program_id(1)
    y = jnp.dot(wa_ref[...], a_ref[0].astype(_COMPUTE_DTYPE), preferred_element_type=jnp.float32)
    y = y + jnp.dot(wc_ref[...], c_ref[0].astype(_COMPUTE_DTYPE),
                    preferred_element_type=jnp.float32)
    y = y + b_ref[...]
    y_ref[0] = y.astype(y_ref.dtype)
    s, ss = _masked_sum_sumsq(y, tl, li, valid_len, full_len)
    _accumulate_stats(sum_ref, ssq_ref, s, ss, li == 0)


def _norm_gelu_kernel(y_ref, sum_ref, ssq_ref, g_ref, be_ref, o_ref, *, inv_n):
    """out = GELU(GroupNorm1(y)) using precomputed per-sample sum/sumsq."""
    mu, rstd = _mu_rstd(sum_ref, ssq_ref, inv_n)
    yn = (y_ref[0].astype(jnp.float32) - mu) * rstd
    yn = yn * g_ref[...] + be_ref[...]
    o_ref[0] = _gelu(yn).astype(o_ref.dtype)


def _fused_skip_fusion_kernel(y1_ref, dec_ref, sum1_ref, ssq1_ref, g1_ref, be1_ref,
                              wd_ref, ws_ref, b2_ref, y2_ref, sum2_ref, ssq2_ref,
                              *, tl, valid_len, full_len, inv_n1):
    """Equal-length fallback: GN+GELU of block-1 pre-activations fused into the fusion conv."""
    li = pl.program_id(1)
    mu, rstd = _mu_rstd(sum1_ref, ssq1_ref, inv_n1)
    s = (y1_ref[0].astype(jnp.float32) - mu) * rstd
    s = _gelu(s * g1_ref[...] + be1_ref[...])                    # skip_t tile (Cdec, TL), f32

    y = jnp.dot(wd_ref[...], dec_ref[0].astype(_COMPUTE_DTYPE), preferred_element_type=jnp.float32)
    y = y + jnp.dot(ws_ref[...], s.astype(_COMPUTE_DTYPE), preferred_element_type=jnp.float32)
    y = y + b2_ref[...]
    y2_ref[0] = y.astype(y2_ref.dtype)
    su, ss = _masked_sum_sumsq(y, tl, li, valid_len, full_len)
    _accumulate_stats(sum2_ref, ssq2_ref, su, ss, li == 0)


def _full_sample_kernel(skp_ref, dec_ref, w1_ref, b1_ref, g1_ref, be1_ref,
                        wd_ref, ws_ref, b2_ref, g2_ref, be2_ref, o_ref,
                        *, valid_len, full_len, inv_n1, inv_n2):
    """Fully VMEM-resident per-sample path: conv1 -> GN+GELU -> fusion conv -> GN+GELU.

    No y1 / skip_t / y2 HBM round trips at all; intermediates live in VMEM/vregs as f32 values.
    """
    y1 = jnp.dot(w1_ref[...], skp_ref[0].astype(_COMPUTE_DTYPE),
                 preferred_element_type=jnp.float32) + b1_ref[...]
    s1, ss1 = _masked_sum_sumsq(y1, full_len, 0, valid_len, full_len)
    mu1 = s1 * inv_n1
    var1 = jnp.maximum(ss1 * inv_n1 - mu1 * mu1, 0.0)
    skip_t = _gelu(((y1 - mu1) * jax.lax.rsqrt(var1 + _GN_EPS)) * g1_ref[...] + be1_ref[...])

    y2 = jnp.dot(wd_ref[...], dec_ref[0].astype(_COMPUTE_DTYPE),
                 preferred_element_type=jnp.float32)
    y2 = y2 + jnp.dot(ws_ref[...], skip_t.astype(_COMPUTE_DTYPE),
                      preferred_element_type=jnp.float32)
    y2 = y2 + b2_ref[...]
    s2, ss2 = _masked_sum_sumsq(y2, full_len, 0, valid_len, full_len)
    mu2 = s2 * inv_n2
    var2 = jnp.maximum(ss2 * inv_n2 - mu2 * mu2, 0.0)
    o = _gelu(((y2 - mu2) * jax.lax.rsqrt(var2 + _GN_EPS)) * g2_ref[...] + be2_ref[...])
    o_ref[0] = o.astype(o_ref.dtype)


# ------------------------------------------------------------------ pallas_call wrappers

def _conv1x1_stats(x, w, b, valid_len, vmem_limit, tile_budget):
    """x: [B, Cin, L] -> (y [B, Cout, L] bf16, sum [B,1,128], sumsq [B,1,128])."""
    B, Cin, L = x.shape
    Cout = w.shape[0]
    per_col = 2 * (Cin * x.dtype.itemsize + Cout * jnp.dtype(_STORE_DTYPE).itemsize)
    fixed = 2 * (Cout * Cin * jnp.dtype(w.dtype).itemsize + Cout * 4 + 2 * 128 * 4)
    tl = _pick_tile_len(L, per_col, fixed, tile_budget)
    kern = partial(_conv_stats_kernel, tl=tl, valid_len=valid_len, full_len=L)
    return pl.pallas_call(
        kern,
        out_shape=(jax.ShapeDtypeStruct((B, Cout, L), _STORE_DTYPE),
                   jax.ShapeDtypeStruct((B, 1, 128), jnp.float32),
                   jax.ShapeDtypeStruct((B, 1, 128), jnp.float32)),
        grid=(B, L // tl),
        in_specs=[
            pl.BlockSpec((1, Cin, tl), lambda bi, li: (bi, 0, li)),
            pl.BlockSpec((Cout, Cin), lambda bi, li: (0, 0)),
            pl.BlockSpec((Cout, 1), lambda bi, li: (0, 0)),
        ],
        out_specs=(
            pl.BlockSpec((1, Cout, tl), lambda bi, li: (bi, 0, li)),
            pl.BlockSpec((1, 1, 128), lambda bi, li: (bi, 0, 0)),
            pl.BlockSpec((1, 1, 128), lambda bi, li: (bi, 0, 0)),
        ),
        compiler_params=pltpu.CompilerParams(
            dimension_semantics=("parallel", "arbitrary"),
            vmem_limit_bytes=vmem_limit),
    )(x, w, b)


def _dual_conv1x1_stats(a, c, wa, wc, b, valid_len, vmem_limit, tile_budget):
    """Fusion conv on two separate channel groups (no concat buffer), with GN stats."""
    B, Ca, L = a.shape
    Cc = c.shape[1]
    Cout = wa.shape[0]
    wb = jnp.dtype(wa.dtype).itemsize
    per_col = 2 * (Ca * a.dtype.itemsize + Cc * c.dtype.itemsize
                   + Cout * jnp.dtype(_STORE_DTYPE).itemsize)
    fixed = 2 * (Cout * (Ca + Cc) * wb + Cout * 4 + 2 * 128 * 4)
    tl = _pick_tile_len(L, per_col, fixed, tile_budget)
    kern = partial(_dual_conv_stats_kernel, tl=tl, valid_len=valid_len, full_len=L)
    return pl.pallas_call(
        kern,
        out_shape=(jax.ShapeDtypeStruct((B, Cout, L), _STORE_DTYPE),
                   jax.ShapeDtypeStruct((B, 1, 128), jnp.float32),
                   jax.ShapeDtypeStruct((B, 1, 128), jnp.float32)),
        grid=(B, L // tl),
        in_specs=[
            pl.BlockSpec((1, Ca, tl), lambda bi, li: (bi, 0, li)),
            pl.BlockSpec((1, Cc, tl), lambda bi, li: (bi, 0, li)),
            pl.BlockSpec((Cout, Ca), lambda bi, li: (0, 0)),
            pl.BlockSpec((Cout, Cc), lambda bi, li: (0, 0)),
            pl.BlockSpec((Cout, 1), lambda bi, li: (0, 0)),
        ],
        out_specs=(
            pl.BlockSpec((1, Cout, tl), lambda bi, li: (bi, 0, li)),
            pl.BlockSpec((1, 1, 128), lambda bi, li: (bi, 0, 0)),
            pl.BlockSpec((1, 1, 128), lambda bi, li: (bi, 0, 0)),
        ),
        compiler_params=pltpu.CompilerParams(
            dimension_semantics=("parallel", "arbitrary"),
            vmem_limit_bytes=vmem_limit),
    )(a, c, wa, wc, b)


def _norm_gelu(y, stats, gamma, beta, n_valid, out_dtype, vmem_limit, tile_budget):
    """GELU(GroupNorm1(y)) given per-sample sum/sumsq; fully parallel over (B, L-tiles)."""
    s_sum, s_ssq = stats
    B, C, L = y.shape
    per_col = 2 * C * (y.dtype.itemsize + jnp.dtype(out_dtype).itemsize)
    fixed = 2 * (2 * 128 * 4 + 2 * C * 4)
    tl = _pick_tile_len(L, per_col, fixed, tile_budget)
    kern = partial(_norm_gelu_kernel, inv_n=1.0 / float(n_valid))
    return pl.pallas_call(
        kern,
        out_shape=jax.ShapeDtypeStruct((B, C, L), out_dtype),
        grid=(B, L // tl),
        in_specs=[
            pl.BlockSpec((1, C, tl), lambda bi, li: (bi, 0, li)),
            pl.BlockSpec((1, 1, 128), lambda bi, li: (bi, 0, 0)),
            pl.BlockSpec((1, 1, 128), lambda bi, li: (bi, 0, 0)),
            pl.BlockSpec((C, 1), lambda bi, li: (0, 0)),
            pl.BlockSpec((C, 1), lambda bi, li: (0, 0)),
        ],
        out_specs=pl.BlockSpec((1, C, tl), lambda bi, li: (bi, 0, li)),
        compiler_params=pltpu.CompilerParams(
            dimension_semantics=("parallel", "parallel"),
            vmem_limit_bytes=vmem_limit),
    )(y, s_sum, s_ssq, gamma, beta)


def _fused_fusion_stats(y1, dec, stats1, gamma1, beta1, w2d, w2s, b2, n1_valid, valid_len,
                        vmem_limit, tile_budget):
    """Equal-length fallback: (GN+GELU of y1) fused with the split-weight fusion conv."""
    s1, ss1 = stats1
    B, Cdec, L = dec.shape
    Cout = w2d.shape[0]
    wb = jnp.dtype(w2d.dtype).itemsize
    per_col = 2 * (Cdec * y1.dtype.itemsize + Cdec * dec.dtype.itemsize
                   + Cout * jnp.dtype(_STORE_DTYPE).itemsize)
    fixed = 2 * (2 * Cout * Cdec * wb + (3 * Cdec + Cout) * 4 + 4 * 128 * 4)
    tl = _pick_tile_len(L, per_col, fixed, tile_budget)
    kern = partial(_fused_skip_fusion_kernel, tl=tl, valid_len=valid_len, full_len=L,
                   inv_n1=1.0 / float(n1_valid))
    return pl.pallas_call(
        kern,
        out_shape=(jax.ShapeDtypeStruct((B, Cout, L), _STORE_DTYPE),
                   jax.ShapeDtypeStruct((B, 1, 128), jnp.float32),
                   jax.ShapeDtypeStruct((B, 1, 128), jnp.float32)),
        grid=(B, L // tl),
        in_specs=[
            pl.BlockSpec((1, Cdec, tl), lambda bi, li: (bi, 0, li)),   # y1 (pre-norm, bf16)
            pl.BlockSpec((1, Cdec, tl), lambda bi, li: (bi, 0, li)),   # decoder features
            pl.BlockSpec((1, 1, 128), lambda bi, li: (bi, 0, 0)),      # sum of y1
            pl.BlockSpec((1, 1, 128), lambda bi, li: (bi, 0, 0)),      # sumsq of y1
            pl.BlockSpec((Cdec, 1), lambda bi, li: (0, 0)),            # gamma1
            pl.BlockSpec((Cdec, 1), lambda bi, li: (0, 0)),            # beta1
            pl.BlockSpec((Cout, Cdec), lambda bi, li: (0, 0)),         # w2_dec
            pl.BlockSpec((Cout, Cdec), lambda bi, li: (0, 0)),         # w2_skip
            pl.BlockSpec((Cout, 1), lambda bi, li: (0, 0)),            # b2
        ],
        out_specs=(
            pl.BlockSpec((1, Cout, tl), lambda bi, li: (bi, 0, li)),
            pl.BlockSpec((1, 1, 128), lambda bi, li: (bi, 0, 0)),
            pl.BlockSpec((1, 1, 128), lambda bi, li: (bi, 0, 0)),
        ),
        compiler_params=pltpu.CompilerParams(
            dimension_semantics=("parallel", "arbitrary"),
            vmem_limit_bytes=vmem_limit),
    )(y1, dec, s1, ss1, gamma1, beta1, w2d, w2s, b2)


def _full_sample_forward(skp, dec, w1, b1, g1, be1, w2d, w2s, b2, g2, be2,
                         valid_len, out_dtype, vmem_limit):
    """Single pallas_call per sample: whole SkipConnection forward with VMEM-resident intermediates."""
    B, Cskip, L = skp.shape
    Cdec = w1.shape[0]
    Cout = w2d.shape[0]
    kern = partial(_full_sample_kernel, valid_len=valid_len, full_len=L,
                   inv_n1=1.0 / float(Cdec * valid_len),
                   inv_n2=1.0 / float(Cout * valid_len))
    return pl.pallas_call(
        kern,
        out_shape=jax.ShapeDtypeStruct((B, Cout, L), out_dtype),
        grid=(B,),
        in_specs=[
            pl.BlockSpec((1, Cskip, L), lambda bi: (bi, 0, 0)),
            pl.BlockSpec((1, Cdec, L), lambda bi: (bi, 0, 0)),
            pl.BlockSpec((Cdec, Cskip), lambda bi: (0, 0)),
            pl.BlockSpec((Cdec, 1), lambda bi: (0, 0)),     # b1
            pl.BlockSpec((Cdec, 1), lambda bi: (0, 0)),     # gamma1
            pl.BlockSpec((Cdec, 1), lambda bi: (0, 0)),     # beta1
            pl.BlockSpec((Cout, Cdec), lambda bi: (0, 0)),  # w2_dec
            pl.BlockSpec((Cout, Cdec), lambda bi: (0, 0)),  # w2_skip
            pl.BlockSpec((Cout, 1), lambda bi: (0, 0)),     # b2
            pl.BlockSpec((Cout, 1), lambda bi: (0, 0)),     # gamma2
            pl.BlockSpec((Cout, 1), lambda bi: (0, 0)),     # beta2
        ],
        out_specs=pl.BlockSpec((1, Cout, L), lambda bi: (bi, 0, 0)),
        compiler_params=pltpu.CompilerParams(
            dimension_semantics=("parallel",),
            vmem_limit_bytes=vmem_limit),
    )(skp, dec, w1, b1, g1, be1, w2d, w2s, b2, g2, be2)


# ------------------------------------------------------------------ glue + params + forward

def _linear_interp_ncl(x, out_len):
    """F.interpolate(mode='linear', align_corners=False) along the last axis of [B, C, L]."""
    in_len = x.shape[-1]
    if in_len == out_len:
        return x
    scale = in_len / out_len
    idx = jnp.arange(out_len, dtype=jnp.float32)
    src = jnp.clip((idx + 0.5) * scale - 0.5, 0.0, in_len - 1)
    lo = jnp.floor(src).astype(jnp.int32)
    hi = jnp.minimum(lo + 1, in_len - 1)
    frac = (src - lo.astype(jnp.float32))[None, None, :]
    return x[:, :, lo] * (1.0 - frac) + x[:, :, hi] * frac


def make_skip_connection_params(skip_channels, decoder_channels, output_channels=None, seed=0):
    """Deterministic init mirroring Conv1dBlock._init_weights (kaiming fan_out, relu), k=1.

    Weights are stored as (Cout, Cin) (== torch conv weight[:, :, 0]); the fusion conv weight is
    stored split into its decoder / skip halves so the kernels never need a channel concat.
    """
    output_channels = output_channels or decoder_channels
    k1, k2, k3 = jax.random.split(jax.random.PRNGKey(seed), 3)
    std1 = math.sqrt(2.0 / decoder_channels)     # fan_out = out_ch * k
    std2 = math.sqrt(2.0 / output_channels)
    return dict(
        w1=jax.random.normal(k1, (decoder_channels, skip_channels), jnp.float32) * std1,
        b1=jnp.zeros((decoder_channels, 1), jnp.float32),
        gamma1=jnp.ones((decoder_channels, 1), jnp.float32),
        beta1=jnp.zeros((decoder_channels, 1), jnp.float32),
        w2_dec=jax.random.normal(k2, (output_channels, decoder_channels), jnp.float32) * std2,
        w2_skip=jax.random.normal(k3, (output_channels, decoder_channels), jnp.float32) * std2,
        b2=jnp.zeros((output_channels, 1), jnp.float32),
        gamma2=jnp.ones((output_channels, 1), jnp.float32),
        beta2=jnp.zeros((output_channels, 1), jnp.float32),
    )


def skip_connection_forward(decoder_features_ncl, skip_features_ncl, params, *,
                            force_multipass=False):
    """decoder_features: [B, dec_ch, L], skip_features: [B, skip_ch, L_skip] -> [B, out_ch, L]."""
    dec = decoder_features_ncl
    skp = skip_features_ncl
    B, _, L = dec.shape
    L_skip = skp.shape[2]
    out_dtype = dec.dtype

    w1 = params["w1"].astype(_COMPUTE_DTYPE)        # bf16 MXU operands (+ halved weight DMA)
    w2d = params["w2_dec"].astype(_COMPUTE_DTYPE)
    w2s = params["w2_skip"].astype(_COMPUTE_DTYPE)
    b1, g1, be1 = params["b1"], params["gamma1"], params["beta1"]
    b2, g2, be2 = params["b2"], params["gamma2"], params["beta2"]
    Cdec, Cskip = w1.shape
    Cout = w2d.shape[0]

    vmem_limit, tile_budget, fused_budget = _vmem_budgets()

    # Pad L to a lane multiple when it is both long and unaligned so tiling is always possible;
    # GN statistics are masked to the valid columns in-kernel and the output is cropped below.
    dec_p = _pad_lanes(dec)
    skp_p = _pad_lanes(skp)
    Lp = dec_p.shape[-1]

    # TODO(synk): use_attention=True path (nn.MultiheadAttention) not implemented; default is False.
    # TODO(synk): v7x dual-TensorCore utilization at B==1 (2-way L split with partial-stat combine).
    if L_skip == L and not force_multipass and _fits_fused(
            B, Cskip, Cdec, Cout, Lp, dec.dtype, out_dtype, fused_budget):
        # Fully VMEM-resident per-sample path: no intermediate HBM round trips at all.
        out_p = _full_sample_forward(skp_p, dec_p, w1, b1, g1, be1, w2d, w2s, b2, g2, be2,
                                     valid_len=L, out_dtype=out_dtype, vmem_limit=vmem_limit)
    else:
        # skip_transform conv pass: pointwise conv + per-sample {sum, sumsq} (one-pass GN stats)
        y1, s1, ss1 = _conv1x1_stats(skp_p, w1, b1, L_skip, vmem_limit, tile_budget)
        if L_skip == L:
            # GN+GELU of y1 fused into the split-weight fusion conv (no skip_t round trip).
            y2, s2, ss2 = _fused_fusion_stats(
                y1, dec_p, (s1, ss1), g1, be1, w2d, w2s, b2,
                n1_valid=Cdec * L_skip, valid_len=L,
                vmem_limit=vmem_limit, tile_budget=tile_budget)
        else:
            skip_t = _norm_gelu(y1, (s1, ss1), g1, be1, Cdec * L_skip, _STORE_DTYPE,
                                vmem_limit, tile_budget)
            # TODO(synk): fold the interpolation into the fusion conv via scalar-prefetched
            # lo/frac indices (PrefetchScalarGridSpec) instead of this XLA gather between calls.
            skip_t = _linear_interp_ncl(skip_t[..., :L_skip].astype(jnp.float32), L)
            skip_t = _pad_lanes(skip_t.astype(_STORE_DTYPE))
            y2, s2, ss2 = _dual_conv1x1_stats(dec_p, skip_t, w2d, w2s, b2, valid_len=L,
                                              vmem_limit=vmem_limit, tile_budget=tile_budget)
        out_p = _norm_gelu(y2, (s2, ss2), g2, be2, Cout * L, out_dtype, vmem_limit, tile_budget)

    return out_p if Lp == L else out_p[..., :L]


# ------------------------------------------------------------------ pure-JAX reference

def _reference_forward(dec, skp, params):
    def block(x, w, b, g, be):
        y = jnp.einsum("oc,bcl->bol", w, x) + b[None]
        mu = jnp.mean(y, axis=(1, 2), keepdims=True)
        var = jnp.mean((y - mu) ** 2, axis=(1, 2), keepdims=True)
        yn = (y - mu) * jax.lax.rsqrt(var + _GN_EPS)
        yn = yn * g[None] + be[None]
        return 0.5 * yn * (1.0 + jax.lax.erf(yn / jnp.sqrt(2.0)))

    s = block(skp, params["w1"], params["b1"], params["gamma1"], params["beta1"])
    s = _linear_interp_ncl(s, dec.shape[-1])
    fused = jnp.concatenate([dec, s], axis=1)
    w2 = jnp.concatenate([params["w2_dec"], params["w2_skip"]], axis=1)
    return block(fused, w2, params["b2"], params["gamma2"], params["beta2"])


if __name__ == "__main__":
    B, skip_ch, dec_ch, L = 2, 4, 8, 16
    key = jax.random.PRNGKey(0)
    k_dec, k_skip, k_skip2, k_dec2, k_skip3 = jax.random.split(key, 5)
    decoder_features = jax.random.normal(k_dec, (B, dec_ch, L), jnp.float32)   # [B, dec_ch, L]
    skip_features = jax.random.normal(k_skip, (B, skip_ch, L), jnp.float32)    # [B, skip_ch, L]

    params = make_skip_connection_params(skip_ch, dec_ch, output_channels=None, seed=0)
    fwd = jax.jit(skip_connection_forward)
    fwd_multipass = jax.jit(partial(skip_connection_forward, force_multipass=True))

    # bf16 MXU operands + bf16 stored intermediates -> looser parity vs the pure-f32 reference.
    tol = dict(atol=6e-2, rtol=6e-2)

    # 1) Equal-length: fully-fused per-sample path (no intermediate HBM round trips).
    out = jax.block_until_ready(fwd(decoder_features, skip_features, params))
    ref = _reference_forward(decoder_features, skip_features, params)
    assert out.shape == (B, dec_ch, L), out.shape
    assert jnp.allclose(out, ref, **tol), float(jnp.max(jnp.abs(out - ref)))

    # 2) Equal-length: tiled multi-pass fallback path (conv+stats, fused GN+fusion, final norm).
    out_mp = jax.block_until_ready(fwd_multipass(decoder_features, skip_features, params))
    assert jnp.allclose(out_mp, ref, **tol), float(jnp.max(jnp.abs(out_mp - ref)))

    # 3) Different skip length: linear-interpolation path.
    skip_features2 = jax.random.normal(k_skip2, (B, skip_ch, L // 2), jnp.float32)
    out2 = jax.block_until_ready(fwd(decoder_features, skip_features2, params))
    ref2 = _reference_forward(decoder_features, skip_features2, params)
    assert out2.shape == (B, dec_ch, L), out2.shape
    assert jnp.allclose(out2, ref2, **tol), float(jnp.max(jnp.abs(out2 - ref2)))

    # 4) Non-lane-aligned longer sequence: exercises lane padding + masked GN statistics.
    L2 = 200
    dec3 = jax.random.normal(k_dec2, (B, dec_ch, L2), jnp.float32)
    skp3 = jax.random.normal(k_skip3, (B, skip_ch, L2), jnp.float32)
    out3 = jax.block_until_ready(fwd(dec3, skp3, params))
    ref3 = _reference_forward(dec3, skp3, params)
    assert out3.shape == (B, dec_ch, L2), out3.shape
    assert jnp.allclose(out3, ref3, **tol), float(jnp.max(jnp.abs(out3 - ref3)))

    print("KERNEL_OK")
</pallas_src>

<mosaic_0001>
module attributes {stable_mosaic.version = 11 : i64} {
  func.func @_full_sample_kernel(%arg0: i32, %arg1: memref<1x4x16xf32, #tpu.memory_space<vmem>>, %arg2: memref<1x8x16xf32, #tpu.memory_space<vmem>>, %arg3: memref<8x4xbf16, #tpu.memory_space<vmem>>, %arg4: memref<8x1xf32, #tpu.memory_space<vmem>>, %arg5: memref<8x1xf32, #tpu.memory_space<vmem>>, %arg6: memref<8x1xf32, #tpu.memory_space<vmem>>, %arg7: memref<8x8xbf16, #tpu.memory_space<vmem>>, %arg8: memref<8x8xbf16, #tpu.memory_space<vmem>>, %arg9: memref<8x1xf32, #tpu.memory_space<vmem>>, %arg10: memref<8x1xf32, #tpu.memory_space<vmem>>, %arg11: memref<8x1xf32, #tpu.memory_space<vmem>>, %arg12: memref<1x8x16xf32, #tpu.memory_space<vmem>>) attributes {dimension_semantics = [#tpu.dimension_semantics<parallel>], iteration_bounds = array<i64: 2>, scalar_prefetch = 0 : i64, scratch_operands = 0 : i64, tpu.core_type = #tpu.core_type<tc>, window_params = [{transform_indices = @transform_0, window_bounds = array<i64: 1, 4, 16>}, {transform_indices = @transform_1, window_bounds = array<i64: 1, 8, 16>}, {pipeline_mode = #tpu.pipeline_mode<synchronous>, transform_indices = @transform_2, window_bounds = array<i64: 8, 4>}, {pipeline_mode = #tpu.pipeline_mode<synchronous>, transform_indices = @transform_3, window_bounds = array<i64: 8, 1>}, {pipeline_mode = #tpu.pipeline_mode<synchronous>, transform_indices = @transform_4, window_bounds = array<i64: 8, 1>}, {pipeline_mode = #tpu.pipeline_mode<synchronous>, transform_indices = @transform_5, window_bounds = array<i64: 8, 1>}, {pipeline_mode = #tpu.pipeline_mode<synchronous>, transform_indices = @transform_6, window_bounds = array<i64: 8, 8>}, {pipeline_mode = #tpu.pipeline_mode<synchronous>, transform_indices = @transform_7, window_bounds = array<i64: 8, 8>}, {pipeline_mode = #tpu.pipeline_mode<synchronous>, transform_indices = @transform_8, window_bounds = array<i64: 8, 1>}, {pipeline_mode = #tpu.pipeline_mode<synchronous>, transform_indices = @transform_9, window_bounds = array<i64: 8, 1>}, {pipeline_mode = #tpu.pipeline_mode<synchronous>, transform_indices = @transform_10, window_bounds = array<i64: 8, 1>}, {transform_indices = @transform_11, window_bounds = array<i64: 1, 8, 16>}]} {
    %c0 = arith.constant 0 : index
    %c0_0 = arith.constant 0 : index
    %0 = vector.load %arg3[%c0, %c0_0] : memref<8x4xbf16, #tpu.memory_space<vmem>>, vector<8x4xbf16>
    %c0_1 = arith.constant 0 : index
    %c0_2 = arith.constant 0 : index
    %c0_3 = arith.constant 0 : index
    %1 = vector.load %arg1[%c0_1, %c0_2, %c0_3] : memref<1x4x16xf32, #tpu.memory_space<vmem>>, vector<1x4x16xf32>
    %2 = vector.shape_cast %1 : vector<1x4x16xf32> to vector<4x16xf32>
    %3 = arith.truncf %2 : vector<4x16xf32> to vector<4x16xbf16>
    %cst = arith.constant dense<0.000000e+00> : vector<8x16xf32>
    %4 = tpu.matmul %0, %3, %cst {dimension_numbers = #tpu.dot_dimension_numbers<[1], [0], [0], [1], [0, 0, 1, 1], [], []>} : vector<8x4xbf16>, vector<4x16xbf16>, vector<8x16xf32> -> vector<8x16xf32>
    %c0_4 = arith.constant 0 : index
    %c0_5 = arith.constant 0 : index
    %5 = vector.load %arg4[%c0_4, %c0_5] : memref<8x1xf32, #tpu.memory_space<vmem>>, vector<8x1xf32>
    %6 = vector.broadcast %5 : vector<8x1xf32> to vector<8x16xf32>
    %7 = arith.addf %4, %6 : vector<8x16xf32>
    %cst_6 = arith.constant dense<0.000000e+00> : vector<8xf32>
    %8 = vector.multi_reduction <add>, %7, %cst_6 [1] : vector<8x16xf32> to vector<8xf32>
    %9 = vector.shape_cast %8 : vector<8xf32> to vector<8x1xf32>
    %cst_7 = arith.constant dense<0.000000e+00> : vector<1xf32>
    %10 = vector.multi_reduction <add>, %9, %cst_7 [0] : vector<8x1xf32> to vector<1xf32>
    %11 = vector.shape_cast %10 : vector<1xf32> to vector<1x1xf32>
    %12 = arith.mulf %7, %7 : vector<8x16xf32>
    %cst_8 = arith.constant dense<0.000000e+00> : vector<8xf32>
    %13 = vector.multi_reduction <add>, %12, %cst_8 [1] : vector<8x16xf32> to vector<8xf32>
    %14 = vector.shape_cast %13 : vector<8xf32> to vector<8x1xf32>
    %cst_9 = arith.constant dense<0.000000e+00> : vector<1xf32>
    %15 = vector.multi_reduction <add>, %14, %cst_9 [0] : vector<8x1xf32> to vector<1xf32>
    %16 = vector.shape_cast %15 : vector<1xf32> to vector<1x1xf32>
    %cst_10 = arith.constant 7.812500e-03 : f32
    %17 = vector.broadcast %cst_10 : f32 to vector<1x1xf32>
    %18 = arith.mulf %11, %17 : vector<1x1xf32>
    %cst_11 = arith.constant 7.812500e-03 : f32
    %19 = vector.broadcast %cst_11 : f32 to vector<1x1xf32>
    %20 = arith.mulf %16, %19 : vector<1x1xf32>
    %21 = arith.mulf %18, %18 : vector<1x1xf32>
    %22 = arith.subf %20, %21 : vector<1x1xf32>
    %cst_12 = arith.constant 0.000000e+00 : f32
    %23 = vector.broadcast %cst_12 : f32 to vector<1x1xf32>
    %24 = arith.maximumf %22, %23 : vector<1x1xf32>
    %25 = vector.broadcast %18 : vector<1x1xf32> to vector<8x16xf32>
    %26 = arith.subf %7, %25 : vector<8x16xf32>
    %cst_13 = arith.constant 9.99999974E-6 : f32
    %27 = vector.broadcast %cst_13 : f32 to vector<1x1xf32>
    %28 = arith.addf %24, %27 : vector<1x1xf32>
    %29 = math.rsqrt %28 : vector<1x1xf32>
    %30 = vector.broadcast %29 : vector<1x1xf32> to vector<8x16xf32>
    %31 = arith.mulf %26, %30 : vector<8x16xf32>
    %c0_14 = arith.constant 0 : index
    %c0_15 = arith.constant 0 : index
    %32 = vector.load %arg5[%c0_14, %c0_15] : memref<8x1xf32, #tpu.memory_space<vmem>>, vector<8x1xf32>
    %33 = vector.broadcast %32 : vector<8x1xf32> to vector<8x16xf32>
    %34 = arith.mulf %31, %33 : vector<8x16xf32>
    %c0_16 = arith.constant 0 : index
    %c0_17 = arith.constant 0 : index
    %35 = vector.load %arg6[%c0_16, %c0_17] : memref<8x1xf32, #tpu.memory_space<vmem>>, vector<8x1xf32>
    %36 = vector.broadcast %35 : vector<8x1xf32> to vector<8x16xf32>
    %37 = arith.addf %34, %36 : vector<8x16xf32>
    %cst_18 = arith.constant 5.000000e-01 : f32
    %38 = vector.broadcast %cst_18 : f32 to vector<8x16xf32>
    %39 = arith.mulf %38, %37 : vector<8x16xf32>
    %cst_19 = arith.constant 0.707106769 : f32
    %40 = vector.broadcast %cst_19 : f32 to vector<8x16xf32>
    %41 = arith.mulf %37, %40 : vector<8x16xf32>
    %42 = math.erf %41 : vector<8x16xf32>
    %cst_20 = arith.constant 1.000000e+00 : f32
    %43 = vector.broadcast %cst_20 : f32 to vector<8x16xf32>
    %44 = arith.addf %43, %42 : vector<8x16xf32>
    %45 = arith.mulf %39, %44 : vector<8x16xf32>
    %c0_21 = arith.constant 0 : index
    %c0_22 = arith.constant 0 : index
    %46 = vector.load %arg7[%c0_21, %c0_22] : memref<8x8xbf16, #tpu.memory_space<vmem>>, vector<8x8xbf16>
    %c0_23 = arith.constant 0 : index
    %c0_24 = arith.constant 0 : index
    %c0_25 = arith.constant 0 : index
    %47 = vector.load %arg2[%c0_23, %c0_24, %c0_25] : memref<1x8x16xf32, #tpu.memory_space<vmem>>, vector<1x8x16xf32>
    %48 = vector.shape_cast %47 : vector<1x8x16xf32> to vector<8x16xf32>
    %49 = arith.truncf %48 : vector<8x16xf32> to vector<8x16xbf16>
    %cst_26 = arith.constant dense<0.000000e+00> : vector<8x16xf32>
    %50 = tpu.matmul %46, %49, %cst_26 {dimension_numbers = #tpu.dot_dimension_numbers<[1], [0], [0], [1], [0, 0, 1, 1], [], []>} : vector<8x8xbf16>, vector<8x16xbf16>, vector<8x16xf32> -> vector<8x16xf32>
    %c0_27 = arith.constant 0 : index
    %c0_28 = arith.constant 0 : index
    %51 = vector.load %arg8[%c0_27, %c0_28] : memref<8x8xbf16, #tpu.memory_space<vmem>>, vector<8x8xbf16>
    %52 = arith.truncf %45 : vector<8x16xf32> to vector<8x16xbf16>
    %cst_29 = arith.constant dense<0.000000e+00> : vector<8x16xf32>
    %53 = tpu.matmul %51, %52, %cst_29 {dimension_numbers = #tpu.dot_dimension_numbers<[1], [0], [0], [1], [0, 0, 1, 1], [], []>} : vector<8x8xbf16>, vector<8x16xbf16>, vector<8x16xf32> -> vector<8x16xf32>
    %54 = arith.addf %50, %53 : vector<8x16xf32>
    %c0_30 = arith.constant 0 : index
    %c0_31 = arith.constant 0 : index
    %55 = vector.load %arg9[%c0_30, %c0_31] : memref<8x1xf32, #tpu.memory_space<vmem>>, vector<8x1xf32>
    %56 = vector.broadcast %55 : vector<8x1xf32> to vector<8x16xf32>
    %57 = arith.addf %54, %56 : vector<8x16xf32>
    %cst_32 = arith.constant dense<0.000000e+00> : vector<8xf32>
    %58 = vector.multi_reduction <add>, %57, %cst_32 [1] : vector<8x16xf32> to vector<8xf32>
    %59 = vector.shape_cast %58 : vector<8xf32> to vector<8x1xf32>
    %cst_33 = arith.constant dense<0.000000e+00> : vector<1xf32>
    %60 = vector.multi_reduction <add>, %59, %cst_33 [0] : vector<8x1xf32> to vector<1xf32>
    %61 = vector.shape_cast %60 : vector<1xf32> to vector<1x1xf32>
    %62 = arith.mulf %57, %57 : vector<8x16xf32>
    %cst_34 = arith.constant dense<0.000000e+00> : vector<8xf32>
    %63 = vector.multi_reduction <add>, %62, %cst_34 [1] : vector<8x16xf32> to vector<8xf32>
    %64 = vector.shape_cast %63 : vector<8xf32> to vector<8x1xf32>
    %cst_35 = arith.constant dense<0.000000e+00> : vector<1xf32>
    %65 = vector.multi_reduction <add>, %64, %cst_35 [0] : vector<8x1xf32> to vector<1xf32>
    %66 = vector.shape_cast %65 : vector<1xf32> to vector<1x1xf32>
    %cst_36 = arith.constant 7.812500e-03 : f32
    %67 = vector.broadcast %cst_36 : f32 to vector<1x1xf32>
    %68 = arith.mulf %61, %67 : vector<1x1xf32>
    %cst_37 = arith.constant 7.812500e-03 : f32
    %69 = vector.broadcast %cst_37 : f32 to vector<1x1xf32>
    %70 = arith.mulf %66, %69 : vector<1x1xf32>
    %71 = arith.mulf %68, %68 : vector<1x1xf32>
    %72 = arith.subf %70, %71 : vector<1x1xf32>
    %cst_38 = arith.constant 0.000000e+00 : f32
    %73 = vector.broadcast %cst_38 : f32 to vector<1x1xf32>
    %74 = arith.maximumf %72, %73 : vector<1x1xf32>
    %75 = vector.broadcast %68 : vector<1x1xf32> to vector<8x16xf32>
    %76 = arith.subf %57, %75 : vector<8x16xf32>
    %cst_39 = arith.constant 9.99999974E-6 : f32
    %77 = vector.broadcast %cst_39 : f32 to vector<1x1xf32>
    %78 = arith.addf %74, %77 : vector<1x1xf32>
    %79 = math.rsqrt %78 : vector<1x1xf32>
    %80 = vector.broadcast %79 : vector<1x1xf32> to vector<8x16xf32>
    %81 = arith.mulf %76, %80 : vector<8x16xf32>
    %c0_40 = arith.constant 0 : index
    %c0_41 = arith.constant 0 : index
    %82 = vector.load %arg10[%c0_40, %c0_41] : memref<8x1xf32, #tpu.memory_space<vmem>>, vector<8x1xf32>
    %83 = vector.broadcast %82 : vector<8x1xf32> to vector<8x16xf32>
    %84 = arith.mulf %81, %83 : vector<8x16xf32>
    %c0_42 = arith.constant 0 : index
    %c0_43 = arith.constant 0 : index
    %85 = vector.load %arg11[%c0_42, %c0_43] : memref<8x1xf32, #tpu.memory_space<vmem>>, vector<8x1xf32>
    %86 = vector.broadcast %85 : vector<8x1xf32> to vector<8x16xf32>
    %87 = arith.addf %84, %86 : vector<8x16xf32>
    %cst_44 = arith.constant 5.000000e-01 : f32
    %88 = vector.broadcast %cst_44 : f32 to vector<8x16xf32>
    %89 = arith.mulf %88, %87 : vector<8x16xf32>
    %cst_45 = arith.constant 0.707106769 : f32
    %90 = vector.broadcast %cst_45 : f32 to vector<8x16xf32>
    %91 = arith.mulf %87, %90 : vector<8x16xf32>
    %92 = math.erf %91 : vector<8x16xf32>
    %cst_46 = arith.constant 1.000000e+00 : f32
    %93 = vector.broadcast %cst_46 : f32 to vector<8x16xf32>
    %94 = arith.addf %93, %92 : vector<8x16xf32>
    %95 = arith.mulf %89, %94 : vector<8x16xf32>
    %c0_47 = arith.constant 0 : index
    %c0_48 = arith.constant 0 : index
    %c0_49 = arith.constant 0 : index
    %96 = vector.load %arg12[%c0_47, %c0_48, %c0_49] : memref<1x8x16xf32, #tpu.memory_space<vmem>>, vector<1x8x16xf32>
    %97 = vector.shape_cast %96 : vector<1x8x16xf32> to vector<8x16xf32>
    %98 = vector.shape_cast %95 : vector<8x16xf32> to vector<1x8x16xf32>
    tpu.vector_store %arg12[%c0_47, %c0_48, %c0_49], %98 {strides = array<i32>} : memref<1x8x16xf32, #tpu.memory_space<vmem>>, vector<1x8x16xf32>,
    return
  }
  func.func @transform_0(%arg0: i32) -> (i32, i32, i32) {
    %c0_i32 = arith.constant 0 : i32
    %c0_i32_0 = arith.constant 0 : i32
    %c0_i32_1 = arith.constant 0 : i32
    return %arg0, %c0_i32, %c0_i32_0 : i32, i32, i32
  }
  func.func @transform_1(%arg0: i32) -> (i32, i32, i32) {
    %c0_i32 = arith.constant 0 : i32
    %c0_i32_0 = arith.constant 0 : i32
    %c0_i32_1 = arith.constant 0 : i32
    return %arg0, %c0_i32, %c0_i32_0 : i32, i32, i32
  }
  func.func @transform_2(%arg0: i32) -> (i32, i32) {
    %c0_i32 = arith.constant 0 : i32
    %c0_i32_0 = arith.constant 0 : i32
    %c0_i32_1 = arith.constant 0 : i32
    return %c0_i32, %c0_i32_0 : i32, i32
  }
  func.func @transform_3(%arg0: i32) -> (i32, i32) {
    %c0_i32 = arith.constant 0 : i32
    %c0_i32_0 = arith.constant 0 : i32
    %c0_i32_1 = arith.constant 0 : i32
    return %c0_i32, %c0_i32_0 : i32, i32
  }
  func.func @transform_4(%arg0: i32) -> (i32, i32) {
    %c0_i32 = arith.constant 0 : i32
    %c0_i32_0 = arith.constant 0 : i32
    %c0_i32_1 = arith.constant 0 : i32
    return %c0_i32, %c0_i32_0 : i32, i32
  }
  func.func @transform_5(%arg0: i32) -> (i32, i32) {
    %c0_i32 = arith.constant 0 : i32
    %c0_i32_0 = arith.constant 0 : i32
    %c0_i32_1 = arith.constant 0 : i32
    return %c0_i32, %c0_i32_0 : i32, i32
  }
  func.func @transform_6(%arg0: i32) -> (i32, i32) {
    %c0_i32 = arith.constant 0 : i32
    %c0_i32_0 = arith.constant 0 : i32
    %c0_i32_1 = arith.constant 0 : i32
    return %c0_i32, %c0_i32_0 : i32, i32
  }
  func.func @transform_7(%arg0: i32) -> (i32, i32) {
    %c0_i32 = arith.constant 0 : i32
    %c0_i32_0 = arith.constant 0 : i32
    %c0_i32_1 = arith.constant 0 : i32
    return %c0_i32, %c0_i32_0 : i32, i32
  }
  func.func @transform_8(%arg0: i32) -> (i32, i32) {
    %c0_i32 = arith.constant 0 : i32
    %c0_i32_0 = arith.constant 0 : i32
    %c0_i32_1 = arith.constant 0 : i32
    return %c0_i32, %c0_i32_0 : i32, i32
  }
  func.func @transform_9(%arg0: i32) -> (i32, i32) {
    %c0_i32 = arith.constant 0 : i32
    %c0_i32_0 = arith.constant 0 : i32
    %c0_i32_1 = arith.constant 0 : i32
    return %c0_i32, %c0_i32_0 : i32, i32
  }
  func.func @transform_10(%arg0: i32) -> (i32, i32) {
    %c0_i32 = arith.constant 0 : i32
    %c0_i32_0 = arith.constant 0 : i32
    %c0_i32_1 = arith.constant 0 : i32
    return %c0_i32, %c0_i32_0 : i32, i32
  }
  func.func @transform_11(%arg0: i32) -> (i32, i32, i32) {
    %c0_i32 = arith.constant 0 : i32
    %c0_i32_0 = arith.constant 0 : i32
    %c0_i32_1 = arith.constant 0 : i32
    return %arg0, %c0_i32, %c0_i32_0 : i32, i32, i32
  }
}

</mosaic_0001>

<llo_original>
// kernel: skip_connection_forward.1
$region0: #{skip_connection_forward.1}
  #allocation0 [shape = 'u32[]', space=smem, size = 0x4, offset = 0x4, fixed_abs, tag = 'smem constant byte address 0x4 - core index']
  #allocation1 [shape = 'u32[144,128]{1,0:T(1,128)}', space=vmem, size = 0x12000, scoped, tag = 'internal scratch']
  %s0 = inlined_call_operand.vmem [shape: f32[2,4,16], index: 0, kind: input, shape index: {}]
  %s1 = inlined_call_operand.vmem [shape: f32[2,8,16], index: 1, kind: input, shape index: {}]
  %s2 = inlined_call_operand.vmem [shape: bf16[8,4], index: 2, kind: input, shape index: {}]
  %s3 = inlined_call_operand.vmem [shape: f32[8,1], index: 3, kind: input, shape index: {}]
  %s4 = inlined_call_operand.vmem [shape: f32[8,1], index: 4, kind: input, shape index: {}]
  %s5 = inlined_call_operand.vmem [shape: f32[8,1], index: 5, kind: input, shape index: {}]
  %s6 = inlined_call_operand.vmem [shape: bf16[8,8], index: 6, kind: input, shape index: {}]
  %s7 = inlined_call_operand.vmem [shape: bf16[8,8], index: 7, kind: input, shape index: {}]
  %s8 = inlined_call_operand.vmem [shape: f32[8,1], index: 8, kind: input, shape index: {}]
  %s9 = inlined_call_operand.vmem [shape: f32[8,1], index: 9, kind: input, shape index: {}]
  %s10 = inlined_call_operand.vmem [shape: f32[8,1], index: 10, kind: input, shape index: {}]
  %s11 = inlined_call_operand.hbm [shape: f32[2,8,16], index: 11, kind: output, shape index: {}]
  %s12 = sld [smem:[#allocation0]]
  $region77: #{skip_connection_forward.1} parent=0
    _
  %s14 = ssub.s32 1, %s12
  %s15 = scalar_select 0, %s14, %s12
  $region1: #{skip_connection_forward.1} parent=0
    #allocation2 [shape = 'u8[8192]{0}', space=vmem, size = 0x2000, scoped, tag = 'output window, operand 0']
    #allocation3 [shape = 's32[2]{0}', space=sflag, size = 0x8, scoped, tag = 'scoped memory for skip_connection_forward.1']
    %16 = vsyncpa [#allocation3], 0
    %s17 = scalar_lea.sflag [#allocation3], 1
    %18 = vsyncpa %s17, 0
    loop: start=0, step=1, limit=4
    $region2: #{skip_connection_forward.1} parent=1 // loop_pre_header
      _
    $region3: #{skip_connection_forward.1} parent=1 // loop_header
      %s20 = sphi 0, %s24
      %p21 = scmp.ge.s32.totalorder %s20, 4
      %s30 = sphi 0, %s32
      %s33 = sphi 0, %s30
      %s34 = sphi 0, %s33
      %s50 = sphi 0, %s34
      %s56 = sphi 0, %s58
      %s59 = sphi 0, %s56
      %s60 = sphi 0, %s59
      %s76 = sphi 0, %s60
      %s80 = sphi 0, %s80
      %s82 = sphi 0, %s80
      %s83 = sphi 0, %s82
      %s97 = sphi 0, %s83
      %s101 = sphi 0, %s101
      %s103 = sphi 0, %s101
      %s104 = sphi 0, %s103
      %s118 = sphi 0, %s104
      %s122 = sphi 0, %s122
      %s124 = sphi 0, %s122
      %s125 = sphi 0, %s124
      %s139 = sphi 0, %s125
      %s143 = sphi 0, %s143
      %s145 = sphi 0, %s143
      %s146 = sphi 0, %s145
      %s160 = sphi 0, %s146
      %s164 = sphi 0, %s164
      %s166 = sphi 0, %s164
      %s167 = sphi 0, %s166
      %s181 = sphi 0, %s167
      %s185 = sphi 0, %s185
      %s187 = sphi 0, %s185
      %s188 = sphi 0, %s187
      %s202 = sphi 0, %s188
      %s206 = sphi 0, %s206
      %s208 = sphi 0, %s206
      %s209 = sphi 0, %s208
      %s223 = sphi 0, %s209
      %s227 = sphi 0, %s227
      %s229 = sphi 0, %s227
      %s230 = sphi 0, %s229
      %s244 = sphi 0, %s230
      %s248 = sphi 0, %s248
      %s250 = sphi 0, %s248
      %s251 = sphi 0, %s250
      %s265 = sphi 0, %s251
      %s271 = sphi 0, %s273
      %s274 = sphi 0, %s271
      %s275 = sphi 0, %s274
      %s291 = sphi 0, %s275
    $region4: #{skip_connection_forward.1} parent=1 // loop_header_branch
      %23 = sbr.rel (%p21) target = $region8
    $region5: #{skip_connection_forward.1} parent=1 // loop_body
      %s25 = ssub.s32 %s20, 1
      %s26 = ssub.s32 %s20, 2
      %s27 = sadd.s32 %s20, 1
      %s28 = ssub.s32 %s20, %s27
      %p29 = scmp.eq.s32.totalorder %s28, 0
      %s31 = sadd.s32 %s30, 1
      %s32 = scalar_select %p29, %s30, %s31
      %p35 = pneg %p29
      %p36 = scmp.eq.s32.totalorder %s20, 1
      %p37 = por %p35, %p36
      %p38 = scmp.ne.s32.totalorder %s30, %s33
      %p39 = scmp.eq.s32.totalorder %s20, 0
      %p40 = por %p38, %p39
      %p41 = scmp.ne.s32.totalorder %s30, %s33
      %p42 = scmp.eq.s32.totalorder %s25, 1
      %p43 = por %p41, %p42
      %p44 = scmp.ne.s32.totalorder %s33, %s34
      %p45 = scmp.eq.s32.totalorder %s25, 0
      %p46 = por %p44, %p45
      %p47 = scmp.ne.s32.totalorder %s33, %s34
      %p48 = scmp.eq.s32.totalorder %s26, 1
      %p49 = por %p47, %p48
      %p51 = scmp.ne.s32.totalorder %s34, %s50
      %p52 = scmp.eq.s32.totalorder %s26, 0
      %p53 = por %p51, %p52
      %s54 = ssub.s32 %s20, %s27
      %p55 = scmp.eq.s32.totalorder %s54, 0
      %s57 = sadd.s32 %s56, 1
      %s58 = scalar_select %p55, %s56, %s57
      %p61 = pneg %p55
      %p62 = scmp.eq.s32.totalorder %s20, 1
      %p63 = por %p61, %p62
      %p64 = scmp.ne.s32.totalorder %s56, %s59
      %p65 = scmp.eq.s32.totalorder %s20, 0
      %p66 = por %p64, %p65
      %p67 = scmp.ne.s32.totalorder %s56, %s59
      %p68 = scmp.eq.s32.totalorder %s25, 1
      %p69 = por %p67, %p68
      %p70 = scmp.ne.s32.totalorder %s59, %s60
      %p71 = scmp.eq.s32.totalorder %s25, 0
      %p72 = por %p70, %p71
      %p73 = scmp.ne.s32.totalorder %s59, %s60
      %p74 = scmp.eq.s32.totalorder %s26, 1
      %p75 = por %p73, %p74
      %p77 = scmp.ne.s32.totalorder %s60, %s76
      %p78 = scmp.eq.s32.totalorder %s26, 0
      %p79 = por %p77, %p78
      %s81 = sadd.s32 %s80, 1
      %p84 = scmp.eq.s32.totalorder %s20, 1
      %p85 = scmp.ne.s32.totalorder %s80, %s82
      %p86 = scmp.eq.s32.totalorder %s20, 0
      %p87 = por %p85, %p86
      %p88 = scmp.ne.s32.totalorder %s80, %s82
      %p89 = scmp.eq.s32.totalorder %s25, 1
      %p90 = por %p88, %p89
      %p91 = scmp.ne.s32.totalorder %s82, %s83
      %p92 = scmp.eq.s32.totalorder %s25, 0
      %p93 = por %p91, %p92
      %p94 = scmp.ne.s32.totalorder %s82, %s83
      %p95 = scmp.eq.s32.totalorder %s26, 1
      %p96 = por %p94, %p95
      %p98 = scmp.ne.s32.totalorder %s83, %s97
      %p99 = scmp.eq.s32.totalorder %s26, 0
      %p100 = por %p98, %p99
      %s102 = sadd.s32 %s101, 1
      %p105 = scmp.eq.s32.totalorder %s20, 1
      %p106 = scmp.ne.s32.totalorder %s101, %s103
      %p107 = scmp.eq.s32.totalorder %s20, 0
      %p108 = por %p106, %p107
      %p109 = scmp.ne.s32.totalorder %s101, %s103
      %p110 = scmp.eq.s32.totalorder %s25, 1
      %p111 = por %p109, %p110
      %p112 = scmp.ne.s32.totalorder %s103, %s104
      %p113 = scmp.eq.s32.totalorder %s25, 0
      %p114 = por %p112, %p113
      %p115 = scmp.ne.s32.totalorder %s103, %s104
      %p116 = scmp.eq.s32.totalorder %s26, 1
      %p117 = por %p115, %p116
      %p119 = scmp.ne.s32.totalorder %s104, %s118
      %p120 = scmp.eq.s32.totalorder %s26, 0
      %p121 = por %p119, %p120
      %s123 = sadd.s32 %s122, 1
      %p126 = scmp.eq.s32.totalorder %s20, 1
      %p127 = scmp.ne.s32.totalorder %s122, %s124
      %p128 = scmp.eq.s32.totalorder %s20, 0
      %p129 = por %p127, %p128
      %p130 = scmp.ne.s32.totalorder %s122, %s124
      %p131 = scmp.eq.s32.totalorder %s25, 1
      %p132 = por %p130, %p131
      %p133 = scmp.ne.s32.totalorder %s124, %s125
      %p134 = scmp.eq.s32.totalorder %s25, 0
      %p135 = por %p133, %p134
      %p136 = scmp.ne.s32.totalorder %s124, %s125
      %p137 = scmp.eq.s32.totalorder %s26, 1
      %p138 = por %p136, %p137
      %p140 = scmp.ne.s32.totalorder %s125, %s139
      %p141 = scmp.eq.s32.totalorder %s26, 0
      %p142 = por %p140, %p141
      %s144 = sadd.s32 %s143, 1
      %p147 = scmp.eq.s32.totalorder %s20, 1
      %p148 = scmp.ne.s32.totalorder %s143, %s145
      %p149 = scmp.eq.s32.totalorder %s20, 0
      %p150 = por %p148, %p149
      %p151 = scmp.ne.s32.totalorder %s143, %s145
      %p152 = scmp.eq.s32.totalorder %s25, 1
      %p153 = por %p151, %p152
      %p154 = scmp.ne.s32.totalorder %s145, %s146
      %p155 = scmp.eq.s32.totalorder %s25, 0
      %p156 = por %p154, %p155
      %p157 = scmp.ne.s32.totalorder %s145, %s146
      %p158 = scmp.eq.s32.totalorder %s26, 1
      %p159 = por %p157, %p158
      %p161 = scmp.ne.s32.totalorder %s146, %s160
      %p162 = scmp.eq.s32.totalorder %s26, 0
      %p163 = por %p161, %p162
      %s165 = sadd.s32 %s164, 1
      %p168 = scmp.eq.s32.totalorder %s20, 1
      %p169 = scmp.ne.s32.totalorder %s164, %s166
      %p170 = scmp.eq.s32.totalorder %s20, 0
      %p171 = por %p169, %p170
      %p172 = scmp.ne.s32.totalorder %s164, %s166
      %p173 = scmp.eq.s32.totalorder %s25, 1
      %p174 = por %p172, %p173
      %p175 = scmp.ne.s32.totalorder %s166, %s167
      %p176 = scmp.eq.s32.totalorder %s25, 0
      %p177 = por %p175, %p176
      %p178 = scmp.ne.s32.totalorder %s166, %s167
      %p179 = scmp.eq.s32.totalorder %s26, 1
      %p180 = por %p178, %p179
      %p182 = scmp.ne.s32.totalorder %s167, %s181
      %p183 = scmp.eq.s32.totalorder %s26, 0
      %p184 = por %p182, %p183
      %s186 = sadd.s32 %s185, 1
      %p189 = scmp.eq.s32.totalorder %s20, 1
      %p190 = scmp.ne.s32.totalorder %s185, %s187
      %p191 = scmp.eq.s32.totalorder %s20, 0
      %p192 = por %p190, %p191
      %p193 = scmp.ne.s32.totalorder %s185, %s187
      %p194 = scmp.eq.s32.totalorder %s25, 1
      %p195 = por %p193, %p194
      %p196 = scmp.ne.s32.totalorder %s187, %s188
      %p197 = scmp.eq.s32.totalorder %s25, 0
      %p198 = por %p196, %p197
      %p199 = scmp.ne.s32.totalorder %s187, %s188
      %p200 = scmp.eq.s32.totalorder %s26, 1
      %p201 = por %p199, %p200
      %p203 = scmp.ne.s32.totalorder %s188, %s202
      %p204 = scmp.eq.s32.totalorder %s26, 0
      %p205 = por %p203, %p204
      %s207 = sadd.s32 %s206, 1
      %p210 = scmp.eq.s32.totalorder %s20, 1
      %p211 = scmp.ne.s32.totalorder %s206, %s208
      %p212 = scmp.eq.s32.totalorder %s20, 0
      %p213 = por %p211, %p212
      %p214 = scmp.ne.s32.totalorder %s206, %s208
      %p215 = scmp.eq.s32.totalorder %s25, 1
      %p216 = por %p214, %p215
      %p217 = scmp.ne.s32.totalorder %s208, %s209
      %p218 = scmp.eq.s32.totalorder %s25, 0
      %p219 = por %p217, %p218
      %p220 = scmp.ne.s32.totalorder %s208, %s209
      %p221 = scmp.eq.s32.totalorder %s26, 1
      %p222 = por %p220, %p221
      %p224 = scmp.ne.s32.totalorder %s209, %s223
      %p225 = scmp.eq.s32.totalorder %s26, 0
      %p226 = por %p224, %p225
      %s228 = sadd.s32 %s227, 1
      %p231 = scmp.eq.s32.totalorder %s20, 1
      %p232 = scmp.ne.s32.totalorder %s227, %s229
      %p233 = scmp.eq.s32.totalorder %s20, 0
      %p234 = por %p232, %p233
      %p235 = scmp.ne.s32.totalorder %s227, %s229
      %p236 = scmp.eq.s32.totalorder %s25, 1
      %p237 = por %p235, %p236
      %p238 = scmp.ne.s32.totalorder %s229, %s230
      %p239 = scmp.eq.s32.totalorder %s25, 0
      %p240 = por %p238, %p239
      %p241 = scmp.ne.s32.totalorder %s229, %s230
      %p242 = scmp.eq.s32.totalorder %s26, 1
      %p243 = por %p241, %p242
      %p245 = scmp.ne.s32.totalorder %s230, %s244
      %p246 = scmp.eq.s32.totalorder %s26, 0
      %p247 = por %p245, %p246
      %s249 = sadd.s32 %s248, 1
      %p252 = scmp.eq.s32.totalorder %s20, 1
      %p253 = scmp.ne.s32.totalorder %s248, %s250
      %p254 = scmp.eq.s32.totalorder %s20, 0
      %p255 = por %p253, %p254
      %p256 = scmp.ne.s32.totalorder %s248, %s250
      %p257 = scmp.eq.s32.totalorder %s25, 1
      %p258 = por %p256, %p257
      %p259 = scmp.ne.s32.totalorder %s250, %s251
      %p260 = scmp.eq.s32.totalorder %s25, 0
      %p261 = por %p259, %p260
      %p262 = scmp.ne.s32.totalorder %s250, %s251
      %p263 = scmp.eq.s32.totalorder %s26, 1
      %p264 = por %p262, %p263
      %p266 = scmp.ne.s32.totalorder %s251, %s265
      %p267 = scmp.eq.s32.totalorder %s26, 0
      %p268 = por %p266, %p267
      %s269 = ssub.s32 %s20, %s27
      %p270 = scmp.eq.s32.totalorder %s269, 0
      %s272 = sadd.s32 %s271, 1
      %s273 = scalar_select %p270, %s271, %s272
      %p276 = pneg %p270
      %p277 = scmp.eq.s32.totalorder %s20, 1
      %p278 = por %p276, %p277
      %p279 = scmp.ne.s32.totalorder %s271, %s274
      %p280 = scmp.eq.s32.totalorder %s20, 0
      %p281 = por %p279, %p280
      %p282 = scmp.ne.s32.totalorder %s271, %s274
      %p283 = scmp.eq.s32.totalorder %s25, 1
      %p284 = por %p282, %p283
      %p285 = scmp.ne.s32.totalorder %s274, %s275
      %p286 = scmp.eq.s32.totalorder %s25, 0
      %p287 = por %p285, %p286
      %p288 = scmp.ne.s32.totalorder %s274, %s275
      %p289 = scmp.eq.s32.totalorder %s26, 1
      %p290 = por %p288, %p289
      %p292 = scmp.ne.s32.totalorder %s275, %s291
      %p293 = scmp.eq.s32.totalorder %s26, 0
      %p294 = por %p292, %p293
      %p295 = scmp.le.s32.totalorder 1, %s20
      %p296 = scmp.lt.s32.totalorder %s20, 3
      %p297 = pnand %p295, %p296
      %p298 = pneg %p297
      // Predicated region
      $region9: #{skip_connection_forward.1} parent=5 // pred_check
        _
      $region10: #{skip_connection_forward.1} parent=5 // pred_check_branch
        %300 = sbr.rel (%p297) target = $region12
      $region11: #{skip_connection_forward.1} parent=5 // pred_region
        %s301 = ssub.s32 %s20, 1
        // Predicated region
        $region13: #{skip_connection_forward.1} parent=11 // pred_check
          %p302 = pneg %p93
        $region14: #{skip_connection_forward.1} parent=11 // pred_check_branch
          %304 = sbr.rel (%p302) target = $region16
        $region15: #{skip_connection_forward.1} parent=11 // pred_region
          _
        $region16: #{skip_connection_forward.1} parent=11 // pred_fallthru
          _
        // Predicated region
        $region17: #{skip_connection_forward.1} parent=11 // pred_check
          %p305 = pneg %p114
        $region18: #{skip_connection_forward.1} parent=11 // pred_check_branch
          %307 = sbr.rel (%p305) target = $region20
        $region19: #{skip_connection_forward.1} parent=11 // pred_region
          _
        $region20: #{skip_connection_forward.1} parent=11 // pred_fallthru
          _
        // Predicated region
        $region21: #{skip_connection_forward.1} parent=11 // pred_check
          %p308 = pneg %p135
        $region22: #{skip_connection_forward.1} parent=11 // pred_check_branch
          %310 = sbr.rel (%p308) target = $region24
        $region23: #{skip_connection_forward.1} parent=11 // pred_region
          _
        $region24: #{skip_connection_forward.1} parent=11 // pred_fallthru
          _
        // Predicated region
        $region25: #{skip_connection_forward.1} parent=11 // pred_check
          %p311 = pneg %p156
        $region26: #{skip_connection_forward.1} parent=11 // pred_check_branch
          %313 = sbr.rel (%p311) target = $region28
        $region27: #{skip_connection_forward.1} parent=11 // pred_region
          _
        $region28: #{skip_connection_forward.1} parent=11 // pred_fallthru
          _
        // Predicated region
        $region29: #{skip_connection_forward.1} parent=11 // pred_check
          %p314 = pneg %p177
        $region30: #{skip_connection_forward.1} parent=11 // pred_check_branch
          %316 = sbr.rel (%p314) target = $region32
        $region31: #{skip_connection_forward.1} parent=11 // pred_region
          _
        $region32: #{skip_connection_forward.1} parent=11 // pred_fallthru
          _
        // Predicated region
        $region33: #{skip_connection_forward.1} parent=11 // pred_check
          %p317 = pneg %p198
        $region34: #{skip_connection_forward.1} parent=11 // pred_check_branch
          %319 = sbr.rel (%p317) target = $region36
        $region35: #{skip_connection_forward.1} parent=11 // pred_region
          _
        $region36: #{skip_connection_forward.1} parent=11 // pred_fallthru
          _
        // Predicated region
        $region37: #{skip_connection_forward.1} parent=11 // pred_check
          %p320 = pneg %p219
        $region38: #{skip_connection_forward.1} parent=11 // pred_check_branch
          %322 = sbr.rel (%p320) target = $region40
        $region39: #{skip_connection_forward.1} parent=11 // pred_region
          _
        $region40: #{skip_connection_forward.1} parent=11 // pred_fallthru
          _
        // Predicated region
        $region41: #{skip_connection_forward.1} parent=11 // pred_check
          %p323 = pneg %p240
        $region42: #{skip_connection_forward.1} parent=11 // pred_check_branch
          %325 = sbr.rel (%p323) target = $region44
        $region43: #{skip_connection_forward.1} parent=11 // pred_region
          _
        $region44: #{skip_connection_forward.1} parent=11 // pred_fallthru
          _
        // Predicated region
        $region45: #{skip_connection_forward.1} parent=11 // pred_check
          %p326 = pneg %p261
        $region46: #{skip_connection_forward.1} parent=11 // pred_check_branch
          %328 = sbr.rel (%p326) target = $region48
        $region47: #{skip_connection_forward.1} parent=11 // pred_region
          _
        $region48: #{skip_connection_forward.1} parent=11 // pred_fallthru
          _
      $region12: #{skip_connection_forward.1} parent=5 // pred_fallthru
        _
      %p329 = scmp.lt.s32.totalorder %s20, 2
      // Predicated region
      $region49: #{skip_connection_forward.1} parent=5 // pred_check
        %p330 = pneg %p329
      $region50: #{skip_connection_forward.1} parent=5 // pred_check_branch
        %332 = sbr.rel (%p330) target = $region52
      $region51: #{skip_connection_forward.1} parent=5 // pred_region
        // Predicated region
        $region53: #{skip_connection_forward.1} parent=51 // pred_check
          %p333 = pneg %p40
        $region54: #{skip_connection_forward.1} parent=51 // pred_check_branch
          %335 = sbr.rel (%p333) target = $region56
        $region55: #{skip_connection_forward.1} parent=51 // pred_region
          %p336 = scmp.lt.s32.totalorder %s20, 1
          %s337 = scalar_select %p336, %s20, 1
          %s338 = smul.addr %s337, 4
          %s339 = scalar_lea.vmem %s0, %s338
        $region56: #{skip_connection_forward.1} parent=51 // pred_fallthru
          _
        // Predicated region
        $region57: #{skip_connection_forward.1} parent=51 // pred_check
          %p340 = pneg %p66
        $region58: #{skip_connection_forward.1} parent=51 // pred_check_branch
          %342 = sbr.rel (%p340) target = $region60
        $region59: #{skip_connection_forward.1} parent=51 // pred_region
          %p343 = scmp.lt.s32.totalorder %s20, 1
          %s344 = scalar_select %p343, %s20, 1
          %s345 = smul.addr %s344, 8
          %s346 = scalar_lea.vmem %s1, %s345
        $region60: #{skip_connection_forward.1} parent=51 // pred_fallthru
          _
      $region52: #{skip_connection_forward.1} parent=5 // pred_fallthru
        _
      %p347 = scmp.le.s32.totalorder 1, %s20
      %p348 = scmp.lt.s32.totalorder %s20, 3
      %p349 = pnand %p347, %p348
      %p350 = pneg %p349
      // Predicated region
      $region61: #{skip_connection_forward.1} parent=5 // pred_check
        _
      $region62: #{skip_connection_forward.1} parent=5 // pred_check_branch
        %352 = sbr.rel (%p349) target = $region64
      $region63: #{skip_connection_forward.1} parent=5 // pred_region
        %s353 = ssub.s32 %s20, 1
        %p354 = scmp.lt.s32.totalorder %s25, 1
        %s355 = scalar_select %p354, %s25, 1
        %s356 = smul.addr %s355, 4
        %s357 = scalar_lea.vmem %s0, %s356
        %p358 = pneg %p46
        %p359 = pneg %p43
        %p360 = scmp.lt.s32.totalorder %s25, 1
        %s361 = scalar_select %p360, %s25, 1
        %s362 = smul.addr %s361, 8
        %s363 = scalar_lea.vmem %s1, %s362
        %p364 = pneg %p72
        %p365 = pneg %p69
        %p366 = pneg %p93
        %p367 = pneg %p90
        %p368 = pneg %p114
        %p369 = pneg %p111
        %p370 = pneg %p135
        %p371 = pneg %p132
        %p372 = pneg %p156
        %p373 = pneg %p153
        %p374 = pneg %p177
        %p375 = pneg %p174
        %p376 = pneg %p198
        %p377 = pneg %p195
        %p378 = pneg %p219
        %p379 = pneg %p216
        %p380 = pneg %p240
        %p381 = pneg %p237
        %p382 = pneg %p261
        %p383 = pneg %p258
        %p384 = pneg %p287
        %p385 = pneg %p284
        %s386 = sand.u32 %s274, 1
        %s387 = scalar_lea.sflag [#allocation3], %s386
        %s388 = sand.u32 %s274, 1
        %s389 = smul.addr %s388, 8
        %s390 = scalar_lea.vmem [#allocation2], %s389
        %p391 = scmp.lt.s32.totalorder %s25, 1
        %s392 = scalar_select %p391, %s25, 1
        %s393 = smul.addr %s392, 4
        %s394 = scalar_lea.vmem %s0, %s393
        %p395 = scmp.lt.s32.totalorder %s25, 1
        %s396 = scalar_select %p395, %s25, 1
        %s397 = smul.addr %s396, 8
        %s398 = scalar_lea.vmem %s1, %s397
        %v400 = vld [vmem:[%s2] sm:$0xf]
        %v401 = vld [vmem:[%s394] sm:$0xf]
        %v402 = vpack.c.bf16 %v401, %v401
        %v403 = vld [vmem:[%s3] sm:$0xff]
        %405 = vset.pattern.permute.xlu0 0
        %406 = vperm.xlu0 %405, %v403
        %v407 = vpop.permute.xlu0 %406
        %vm409 = vcmask 31744
        %v411 = vsel %vm409, %v400, 0
        %vm413 = vcmask 1041408
        %v415 = vsel %vm413, %v402, 0
        %417 = vmatprep.subr.bf16.mxu0 0
        %418 = vmatpush1.bf16.msra.mxu0 %v415
        %419 = vmatprep.subr.bf16.mxu0 0
        %420 = vmatpush1.bf16.msra.mxu0 0
        %421 = vmatprep.subr.bf16.mxu0 0
        %422 = vmatpush1.bf16.msra.mxu0 0
        %423 = vmatprep.subr.bf16.mxu0 0
        %424 = vmatpush1.bf16.msra.mxu0 0
        %425 = vmatprep.subr.bf16.mxu0 0
        %426 = vmatpush1.bf16.msra.mxu0 0
        %427 = vmatprep.subr.bf16.mxu0 0
        %428 = vmatpush1.bf16.msra.mxu0 0
        %429 = vmatprep.subr.bf16.mxu0 0
        %430 = vmatpush1.bf16.msra.mxu0 0
        %431 = vmatprep.subr.bf16.mxu0 0
        %432 = vmatpush1.bf16.msra.mxu0 0
        %433 = vmatprep.subr.bf16.mxu0 0
        %434 = vmatpush1.bf16.msra.mxu0 0
        %435 = vmatprep.subr.bf16.mxu0 0
        %436 = vmatpush1.bf16.msra.mxu0 0
        %437 = vmatprep.subr.bf16.mxu0 0
        %438 = vmatpush1.bf16.msra.mxu0 0
        %439 = vmatprep.subr.bf16.mxu0 0
        %440 = vmatpush1.bf16.msra.mxu0 0
        %441 = vmatprep.subr.bf16.mxu0 0
        %442 = vmatpush1.bf16.msra.mxu0 0
        %443 = vmatprep.subr.bf16.mxu0 0
        %444 = vmatpush1.bf16.msra.mxu0 0
        %445 = vmatprep.subr.bf16.mxu0 0
        %446 = vmatpush1.bf16.msra.mxu0 0
        %447 = vmatprep.subr.bf16.mxu0 0
        %448 = vmatpush1.bf16.msra.mxu0 0
        %449 = vmatprep.mubr.bf16.mxu0 0
        %450 = vmatmul.mubr.bf16.gmra.mrb[0].mxu0 %v411
        %v451 = vpop.f32.mrb[0].mxu0
        %v452 = vadd.f32 %v407, %v451
        %v453 = vpop.f32.mrb[0].mxu0
        %v454 = vpop.f32.mrb[0].mxu0
        %v455 = vpop.f32.mrb[0].mxu0
        %456 = vdwg.mxu0
        %vm457 = vcmask 130048
        %v458 = vsel %vm457, %v452, 0.0
        %459 = vadd.xlane.f32.xlu0 %v458
        %v460 = vpop.xlane.xlu0 %459
        %v461 = vrot.slane %v460, 4
        %v462 = vadd.f32 %v460, %v461
        %v463 = vrot.slane %v462, 2
        %v464 = vadd.f32 %v462, %v463
        %v465 = vrot.slane %v464, 1
        %v466 = vadd.f32 %v464, %v465
        %v467 = vmul.f32 %v452, %v452
        %v468 = vsel %vm457, %v467, 0.0
        %469 = vadd.xlane.f32.xlu0 %v468
        %v470 = vpop.xlane.xlu0 %469
        %v471 = vrot.slane %v470, 4
        %v472 = vadd.f32 %v470, %v471
        %v473 = vrot.slane %v472, 2
        %v474 = vadd.f32 %v472, %v473
        %v475 = vrot.slane %v474, 1
        %v476 = vadd.f32 %v474, %v475
        %v477 = vmul.f32 %v466, 0.0078125
        %v478 = vmul.f32 %v476, 0.0078125
        %v479 = vmul.f32 %v477, %v477
        %v480 = vsub.f32 %v478, %v479
        %v481 = vmax.f32 %v480, 0.0
        %v482 = vsub.f32 %v452, %v477
        %v483 = vadd.f32 %v481, 1e-05
        %v484 = vrsqrt.pop %v483
        %v485 = vmul.f32 %v482, %v484
        %v486 = vld [vmem:[%s4] sm:$0xff]
        %488 = vset.pattern.permute.xlu0 0
        %489 = vperm.xlu0 %488, %v486
        %v490 = vpop.permute.xlu0 %489
        %v492 = vmul.f32 %v485, %v490
        %v493 = vld [vmem:[%s5] sm:$0xff]
        %495 = vset.pattern.permute.xlu0 0
        %496 = vperm.xlu0 %495, %v493
        %v497 = vpop.permute.xlu0 %496
        %v499 = vadd.f32 %v492, %v497
        %v500 = vmul.f32 %v499, 0.5
        %v501 = vmul.f32 %v499, 0.70710677
        %v502 = verf.f32.pop %v501
        %v503 = vadd.f32 %v502, 1.0
        %v504 = vmul.f32 %v500, %v503
        %v505 = vld [vmem:[%s6] sm:$0xf]
        %v506 = vld [vmem:[%s398] sm:$0xff]
        %v507 = vpack.c.bf16 %v506, %v506
        %v508 = vld [vmem:[%s7] sm:$0xf]
        %v509 = vpack.c.bf16 %v504, %v504
        %vm510 = vcmask 64512
        %v512 = vsel %vm510, %v508, 0
        %vm514 = vcmask 1043456
        %v516 = vsel %vm514, %v509, 0
        %518 = vmatprep.subr.bf16.mxu0 0
        %519 = vmatpush1.bf16.msra.mxu0 %v516
        %520 = vmatprep.subr.bf16.mxu0 0
        %521 = vmatpush1.bf16.msra.mxu0 0
        %522 = vmatprep.subr.bf16.mxu0 0
        %523 = vmatpush1.bf16.msra.mxu0 0
        %524 = vmatprep.subr.bf16.mxu0 0
        %525 = vmatpush1.bf16.msra.mxu0 0
        %526 = vmatprep.subr.bf16.mxu0 0
        %527 = vmatpush1.bf16.msra.mxu0 0
        %528 = vmatprep.subr.bf16.mxu0 0
        %529 = vmatpush1.bf16.msra.mxu0 0
        %530 = vmatprep.subr.bf16.mxu0 0
        %531 = vmatpush1.bf16.msra.mxu0 0
        %532 = vmatprep.subr.bf16.mxu0 0
        %533 = vmatpush1.bf16.msra.mxu0 0
        %534 = vmatprep.subr.bf16.mxu0 0
        %535 = vmatpush1.bf16.msra.mxu0 0
        %536 = vmatprep.subr.bf16.mxu0 0
        %537 = vmatpush1.bf16.msra.mxu0 0
        %538 = vmatprep.subr.bf16.mxu0 0
        %539 = vmatpush1.bf16.msra.mxu0 0
        %540 = vmatprep.subr.bf16.mxu0 0
        %541 = vmatpush1.bf16.msra.mxu0 0
        %542 = vmatprep.subr.bf16.mxu0 0
        %543 = vmatpush1.bf16.msra.mxu0 0
        %544 = vmatprep.subr.bf16.mxu0 0
        %545 = vmatpush1.bf16.msra.mxu0 0
        %546 = vmatprep.subr.bf16.mxu0 0
        %547 = vmatpush1.bf16.msra.mxu0 0
        %548 = vmatprep.subr.bf16.mxu0 0
        %549 = vmatpush1.bf16.msra.mxu0 0
        %550 = vmatprep.mubr.bf16.mxu0 0
        %551 = vmatmul.mubr.bf16.gmra.mrb[0].mxu0 %v512
        %v552 = vpop.f32.mrb[0].mxu0
        %v553 = vadd.f32 0.0, %v552
        %v554 = vpop.f32.mrb[0].mxu0
        %v555 = vpop.f32.mrb[0].mxu0
        %v556 = vpop.f32.mrb[0].mxu0
        %557 = vdwg.mxu0
        %v559 = vsel %vm510, %v505, 0
        %v562 = vsel %vm514, %v507, 0
        %564 = vmatprep.subr.bf16.mxu0 0
        %565 = vmatpush1.bf16.msra.mxu0 %v562
        %566 = vmatprep.subr.bf16.mxu0 0
        %567 = vmatpush1.bf16.msra.mxu0 0
        %568 = vmatprep.subr.bf16.mxu0 0
        %569 = vmatpush1.bf16.msra.mxu0 0
        %570 = vmatprep.subr.bf16.mxu0 0
        %571 = vmatpush1.bf16.msra.mxu0 0
        %572 = vmatprep.subr.bf16.mxu0 0
        %573 = vmatpush1.bf16.msra.mxu0 0
        %574 = vmatprep.subr.bf16.mxu0 0
        %575 = vmatpush1.bf16.msra.mxu0 0
        %576 = vmatprep.subr.bf16.mxu0 0
        %577 = vmatpush1.bf16.msra.mxu0 0
        %578 = vmatprep.subr.bf16.mxu0 0
        %579 = vmatpush1.bf16.msra.mxu0 0
        %580 = vmatprep.subr.bf16.mxu0 0
        %581 = vmatpush1.bf16.msra.mxu0 0
        %582 = vmatprep.subr.bf16.mxu0 0
        %583 = vmatpush1.bf16.msra.mxu0 0
        %584 = vmatprep.subr.bf16.mxu0 0
        %585 = vmatpush1.bf16.msra.mxu0 0
        %586 = vmatprep.subr.bf16.mxu0 0
        %587 = vmatpush1.bf16.msra.mxu0 0
        %588 = vmatprep.subr.bf16.mxu0 0
        %589 = vmatpush1.bf16.msra.mxu0 0
        %590 = vmatprep.subr.bf16.mxu0 0
        %591 = vmatpush1.bf16.msra.mxu0 0
        %592 = vmatprep.subr.bf16.mxu0 0
        %593 = vmatpush1.bf16.msra.mxu0 0
        %594 = vmatprep.subr.bf16.mxu0 0
        %595 = vmatpush1.bf16.msra.mxu0 0
        %596 = vmatprep.mubr.bf16.mxu0 0
        %597 = vmatmul.mubr.bf16.gmra.mrb[0].mxu0 %v559
        %v598 = vpop.f32.mrb[0].mxu0
        %v599 = vadd.f32 %v553, %v598
        %v600 = vpop.f32.mrb[0].mxu0
        %v601 = vpop.f32.mrb[0].mxu0
        %v602 = vpop.f32.mrb[0].mxu0
        %603 = vdwg.mxu0
        %v604 = vld [vmem:[%s8] sm:$0xff]
        %606 = vset.pattern.permute.xlu0 0
        %607 = vperm.xlu0 %606, %v604
        %v608 = vpop.permute.xlu0 %607
        %v610 = vadd.f32 %v599, %v608
        %v611 = vsel %vm457, %v610, 0.0
        %612 = vadd.xlane.f32.xlu0 %v611
        %v613 = vpop.xlane.xlu0 %612
        %v614 = vrot.slane %v613, 4
        %v615 = vadd.f32 %v613, %v614
        %v616 = vrot.slane %v615, 2
        %v617 = vadd.f32 %v615, %v616
        %v618 = vrot.slane %v617, 1
        %v619 = vadd.f32 %v617, %v618
        %v620 = vmul.f32 %v610, %v610
        %v621 = vsel %vm457, %v620, 0.0
        %622 = vadd.xlane.f32.xlu0 %v621
        %v623 = vpop.xlane.xlu0 %622
        %v624 = vrot.slane %v623, 4
        %v625 = vadd.f32 %v623, %v624
        %v626 = vrot.slane %v625, 2
        %v627 = vadd.f32 %v625, %v626
        %v628 = vrot.slane %v627, 1
        %v629 = vadd.f32 %v627, %v628
        %v630 = vmul.f32 %v619, 0.0078125
        %v631 = vmul.f32 %v629, 0.0078125
        %v632 = vmul.f32 %v630, %v630
        %v633 = vsub.f32 %v631, %v632
        %v634 = vmax.f32 %v633, 0.0
        %v635 = vsub.f32 %v610, %v630
        %v636 = vadd.f32 %v634, 1e-05
        %v637 = vrsqrt.pop %v636
        %v638 = vmul.f32 %v635, %v637
        %v639 = vld [vmem:[%s9] sm:$0xff]
        %641 = vset.pattern.permute.xlu0 0
        %642 = vperm.xlu0 %641, %v639
        %v643 = vpop.permute.xlu0 %642
        %v645 = vmul.f32 %v638, %v643
        %v646 = vld [vmem:[%s10] sm:$0xff]
        %648 = vset.pattern.permute.xlu0 0
        %649 = vperm.xlu0 %648, %v646
        %v650 = vpop.permute.xlu0 %649
        %v652 = vadd.f32 %v645, %v650
        %v653 = vmul.f32 %v652, 0.5
        %v654 = vmul.f32 %v652, 0.70710677
        %v655 = verf.f32.pop %v654
        %v656 = vadd.f32 %v655, 1.0
        %v657 = vmul.f32 %v653, %v656
        %658 = vst.msk [vmem:[%s390] sm:$0xff] %vm457, %v657
        %s659 = sand.u32 %s274, 1
        %s660 = scalar_lea.sflag [#allocation3], %s659
        %s661 = sand.u32 %s274, 1
        %s662 = smul.addr %s661, 8
        %s663 = scalar_lea.vmem [#allocation2], %s662
        // Predicated region
        $region65: #{skip_connection_forward.1} parent=63 // pred_check
          %p664 = pneg %p284
        $region66: #{skip_connection_forward.1} parent=63 // pred_check_branch
          %666 = sbr.rel (%p664) target = $region68
        $region67: #{skip_connection_forward.1} parent=63 // pred_region
          %s668 = ssub.s32 128, 128
          %669 = vsyncadd %s660, %s668
          %s670 = smul.addr %s25, 128
          %s671 = scalar_lea.hbm %s11, %s670
          %s673 = sshll.u32 %s663, 4
          %s674 = int_to_ptr.vmem [resolvable:$true] %s673
          %676 = dma.vmem_to_hbm [thread:$0]  %s674, 128, %s671, %s660
        $region68: #{skip_connection_forward.1} parent=63 // pred_fallthru
          _
      $region64: #{skip_connection_forward.1} parent=5 // pred_fallthru
        _
      %p677 = scmp.le.s32.totalorder 2, %s20
      // Predicated region
      $region69: #{skip_connection_forward.1} parent=5 // pred_check
        %p678 = pneg %p677
      $region70: #{skip_connection_forward.1} parent=5 // pred_check_branch
        %680 = sbr.rel (%p678) target = $region72
      $region71: #{skip_connection_forward.1} parent=5 // pred_region
        %s681 = ssub.s32 %s20, 2
        // Predicated region
        $region73: #{skip_connection_forward.1} parent=71 // pred_check
          %p682 = pneg %p290
        $region74: #{skip_connection_forward.1} parent=71 // pred_check_branch
          %684 = sbr.rel (%p682) target = $region76
        $region75: #{skip_connection_forward.1} parent=71 // pred_region
          %s685 = sand.u32 %s275, 1
          %s686 = scalar_lea.sflag [#allocation3], %s685
          %s687 = sand.u32 %s275, 1
          %s688 = smul.addr %s687, 8
          %s689 = scalar_lea.vmem [#allocation2], %s688
          %690 = dma.done %s686, 128
        $region76: #{skip_connection_forward.1} parent=71 // pred_fallthru
          _
      $region72: #{skip_connection_forward.1} parent=5 // pred_fallthru
        _
    $region6: #{skip_connection_forward.1} parent=1 // loop_footer
      %s24 = sadd.s32 1, %s20
    $region7: #{skip_connection_forward.1} parent=1 // loop_footer_branch
      %19 = sbr.rel target = $region3
    $region8: #{skip_connection_forward.1} parent=1 // loop_exit
      _
    %691 = vsyncpa [#allocation3], 1
    %s692 = scalar_lea.sflag [#allocation3], 1
    %693 = vsyncpa %s692, 1

</llo_original>
